<compile_context>
chip_gen: v5e
topology: v5e:2x2
jax: 0.10.0
libtpu: 0.0.40
codegen_flags: <defaults>
</compile_context>

<pallas_src>
import jax
import jax.numpy as jnp
import numpy as np
from jax import lax
from jax.experimental import pallas as pl
from jax.experimental.pallas import tpu as pltpu


# ----------------------------------------------------------------------------
# helpers
# ----------------------------------------------------------------------------
def _round_up(x, m):
    return ((x + m - 1) // m) * m


def _largest_divisor_tile(n, align, max_tile):
    """Largest multiple of `align` that divides n and is <= max_tile.

    `n` is assumed to already be a multiple of `align`.
    """
    if n <= max_tile:
        return n
    t = max_tile - (max_tile % align)
    while t >= align:
        if n % t == 0:
            return t
        t -= align
    return align


# ----------------------------------------------------------------------------
# Kernel 1: tiled (M, K) @ (K, N) + bias, bf16 operands, f32 accumulation.
# Used for the hoisted input projection and the hoisted vocab FC.
# Grid = (N tiles, M tiles): the N (weight) axis is OUTER so each (K, tn)
# weight tile is DMA'd exactly once and stays resident across the inner row
# sweep (weight reuse fix for the memory-bound vocab FC).
# ----------------------------------------------------------------------------
def _matmul_bias_kernel(x_ref, w_ref, b_ref, o_ref):
    acc = jnp.dot(x_ref[...], w_ref[...], preferred_element_type=jnp.float32)
    o_ref[...] = (acc + b_ref[...]).astype(o_ref.dtype)


def _matmul_bias(x, w, b, out_dtype=jnp.float32):
    """x: (M, K), w: (K, N), b: (N,) -> (M, N) in `out_dtype`."""
    M, K = x.shape
    _, N = w.shape

    # Row tiles: <=128 (matches v5e's 4x128x128 MXU, single vst slot).
    Mp = _round_up(M, 8)
    tm = min(128, Mp)
    Mp = _round_up(Mp, tm)

    # Lane-dense N tiles: pad N up to the 512-wide tile target so tn stays
    # large for arbitrary vocab sizes (no collapse to 128-wide tiles).
    tn = min(512, _round_up(N, 128))
    Np = _round_up(N, tn)

    xp = x.astype(jnp.bfloat16)
    if Mp != M:
        xp = jnp.pad(xp, ((0, Mp - M), (0, 0)))
    wp = w.astype(jnp.bfloat16)
    if Np != N:
        wp = jnp.pad(wp, ((0, 0), (0, Np - N)))
    bp = b.reshape(1, N).astype(jnp.float32)
    if Np != N:
        bp = jnp.pad(bp, ((0, 0), (0, Np - N)))

    out = pl.pallas_call(
        _matmul_bias_kernel,
        out_shape=jax.ShapeDtypeStruct((Mp, Np), out_dtype),
        grid_spec=pltpu.PrefetchScalarGridSpec(
            num_scalar_prefetch=0,
            grid=(Np // tn, Mp // tm),          # N outer (weight reuse), M inner
            in_specs=[
                pl.BlockSpec((tm, K), lambda j, i: (i, 0)),
                pl.BlockSpec((K, tn), lambda j, i: (0, j)),   # constant over inner sweep
                pl.BlockSpec((1, tn), lambda j, i: (0, j)),
            ],
            out_specs=pl.BlockSpec((tm, tn), lambda j, i: (i, j)),
        ),
        compiler_params=pltpu.CompilerParams(
            dimension_semantics=("parallel", "parallel"),
            vmem_limit_bytes=32 * 1024 * 1024),   # explicit budget (v7x 64 MiB phys)
    )(xp, wp, bp)

    if Mp != M or Np != N:
        out = out[:M, :N]
    return out


# ----------------------------------------------------------------------------
# Kernel 2: the serial LSTM recurrence, streamed over a (batch, time) grid.
# One LSTM step per grid iteration; h/c carried in VMEM scratch across the
# "arbitrary" time axis; BlockSpec double-buffers the per-step xg slice in
# and the per-step h slice out.
# ----------------------------------------------------------------------------
def _lstm_step_kernel(xg_ref, whh_ref, h_out_ref, h_sc, c_sc):
    """xg_ref:    (1, bb, 4H) bf16  precomputed x_t @ W_ih^T + (b_ih + b_hh)
       whh_ref:   (H, 4H)     f32   W_hh^T (resident across all grid steps)
       h_out_ref: (1, bb, H)  bf16  hidden state for this step (streamed out)
       h_sc/c_sc: (bb, H)     f32   carried recurrent state (VMEM scratch)
    """
    t = pl.program_id(1)

    @pl.when(t == 0)
    def _():
        h_sc[...] = jnp.zeros_like(h_sc)
        c_sc[...] = jnp.zeros_like(c_sc)

    H = h_sc.shape[-1]
    # TODO(synk): on v6e/v7x, pltpu.matmul_push_rhs/acc_lhs/pop could pin
    # W_hh^T in the MXU staging registers across all serial steps.
    gates = xg_ref[0].astype(jnp.float32) + jnp.dot(
        h_sc[...], whh_ref[...], preferred_element_type=jnp.float32)
    # NOTE: H % 128 == 0 makes these slices lane-tile aligned; smaller H
    # (like the H=32 test) subdivides a single vreg (correct, a bit slower).
    i_g = jax.nn.sigmoid(gates[:, 0 * H:1 * H])
    f_g = jax.nn.sigmoid(gates[:, 1 * H:2 * H])
    g_g = jnp.tanh(gates[:, 2 * H:3 * H])
    o_g = jax.nn.sigmoid(gates[:, 3 * H:4 * H])
    c = f_g * c_sc[...] + i_g * g_g
    h = o_g * jnp.tanh(c)
    c_sc[...] = c
    h_sc[...] = h
    h_out_ref[0] = h.astype(h_out_ref.dtype)


def _lstm_recurrence(xg, whh):
    """xg: (L, Bp, 4H) bf16 time-major; whh: (H, 4H) -> h_all: (L, Bp, H) bf16."""
    L, Bp, G = xg.shape
    H = G // 4

    # Batch block: a multiple of 8 dividing Bp; prefer >=2 blocks when Bp>8 so
    # the "parallel" batch axis can be sharded across v7x's two TensorCores.
    if Bp <= 8:
        bb = Bp
    else:
        bb = _largest_divisor_tile(Bp, 8, min(128, _round_up(Bp // 2, 8)))

    return pl.pallas_call(
        _lstm_step_kernel,
        out_shape=jax.ShapeDtypeStruct((L, Bp, H), jnp.bfloat16),
        grid_spec=pltpu.PrefetchScalarGridSpec(
            num_scalar_prefetch=0,
            grid=(Bp // bb, L),                       # batch parallel, time serial
            in_specs=[
                pl.BlockSpec((1, bb, G), lambda b, t: (t, b, 0)),
                pl.BlockSpec((H, G), lambda b, t: (0, 0)),     # fetched once
            ],
            out_specs=pl.BlockSpec((1, bb, H), lambda b, t: (t, b, 0)),
            scratch_shapes=[pltpu.VMEM((bb, H), jnp.float32),
                            pltpu.VMEM((bb, H), jnp.float32)],
        ),
        compiler_params=pltpu.CompilerParams(
            dimension_semantics=("parallel", "arbitrary"),
            vmem_limit_bytes=32 * 1024 * 1024),
    )(xg, whh.astype(jnp.float32))


# ----------------------------------------------------------------------------
# Wrapper: full WordLSTM forward
# ----------------------------------------------------------------------------
def word_lstm_pallas(topic, caption, params):
    """topic: (B, D_in) f32; caption: (B, L) int32 -> (B, L, vocab) f32."""
    # TODO(synk): embedding gather + concat is indexing glue, kept in plain JAX.
    emb = jnp.take(params["embedding"], caption, axis=0)        # (B, L, D)
    x = jnp.concatenate([topic[:, None, :], emb], axis=1)       # (B, T, D), T = L+1
    B, T, D = x.shape
    L = T - 1                                                    # last output is dropped
    H = params["w_hh"].shape[0]
    V = params["fc_w"].shape[1]

    # Skip the last recurrence step entirely: its h/output are never used.
    x = x[:, :L, :].astype(jnp.float32)

    # Pad batch to a multiple of 8 sublanes.
    Bp = max(8, _round_up(B, 8))
    if Bp != B:
        x = jnp.pad(x, ((0, Bp - B), (0, 0), (0, 0)))
    x_seq = jnp.transpose(x, (1, 0, 2))                          # (L, Bp, D), D-wide -> cheap

    # (1) Hoisted input projection; emit the gate tensor in bf16 to halve the
    #     xg HBM round trip between kernel 1 and the recurrence.
    bias = (params["b_ih"] + params["b_hh"]).astype(jnp.float32)  # (4H,)
    xg = _matmul_bias(x_seq.reshape(L * Bp, D), params["w_ih"], bias,
                      out_dtype=jnp.bfloat16)
    xg = xg.reshape(L, Bp, 4 * H)                                # (L, Bp, 4H) bf16

    # (2) Streamed serial recurrence (time grid axis, h/c in VMEM scratch).
    h_all = _lstm_recurrence(xg, params["w_hh"])                 # (L, Bp, H) bf16

    # (3) Batch-major hidden states (H-wide transpose, ~V/H times cheaper than
    #     transposing the logits afterwards) -> hoisted vocab FC whose output
    #     already lands in (B, L, V) order.  No final logits transpose.
    h_bm = jnp.transpose(h_all, (1, 0, 2)).reshape(Bp * L, H)
    logits = _matmul_bias(h_bm, params["fc_w"], params["fc_b"],
                          out_dtype=jnp.float32)                 # (Bp*L, V) f32
    return logits.reshape(Bp, L, V)[:B]                          # (B, L, V)


# ----------------------------------------------------------------------------
# Pure-JAX f32 reference (mirrors PyTorch semantics) for correctness checking
# ----------------------------------------------------------------------------
def word_lstm_reference(topic, caption, params):
    emb = jnp.take(params["embedding"], caption, axis=0)
    x = jnp.concatenate([topic[:, None, :], emb], axis=1)        # (B, T, D)
    B, T, D = x.shape
    H = params["w_hh"].shape[0]
    b = params["b_ih"] + params["b_hh"]

    def step(carry, x_t):
        h, c = carry
        gates = x_t @ params["w_ih"] + h @ params["w_hh"] + b
        i = jax.nn.sigmoid(gates[:, 0 * H:1 * H])
        f = jax.nn.sigmoid(gates[:, 1 * H:2 * H])
        g = jnp.tanh(gates[:, 2 * H:3 * H])
        o = jax.nn.sigmoid(gates[:, 3 * H:4 * H])
        c = f * c + i * g
        h = o * jnp.tanh(c)
        return (h, c), h

    init = (jnp.zeros((B, H), jnp.float32), jnp.zeros((B, H), jnp.float32))
    _, hs = lax.scan(step, init, jnp.transpose(x, (1, 0, 2)))
    hs = jnp.transpose(hs, (1, 0, 2))                            # (B, T, H)
    out = hs @ params["fc_w"] + params["fc_b"]
    return out[:, :-1, :]


def init_params(key, word_input_dim, word_hidden_dim, vocab_size):
    ks = jax.random.split(key, 7)
    s = 0.1
    return {
        "embedding": s * jax.random.normal(ks[0], (vocab_size, word_input_dim), jnp.float32),
        # stored transposed relative to torch: (D_in, 4H) and (H, 4H)
        "w_ih": s * jax.random.normal(ks[1], (word_input_dim, 4 * word_hidden_dim), jnp.float32),
        "w_hh": s * jax.random.normal(ks[2], (word_hidden_dim, 4 * word_hidden_dim), jnp.float32),
        "b_ih": s * jax.random.normal(ks[3], (4 * word_hidden_dim,), jnp.float32),
        "b_hh": s * jax.random.normal(ks[4], (4 * word_hidden_dim,), jnp.float32),
        # fc stored as (H, V) == fc.weight^T
        "fc_w": s * jax.random.normal(ks[5], (word_hidden_dim, vocab_size), jnp.float32),
        "fc_b": s * jax.random.normal(ks[6], (vocab_size,), jnp.float32),
    }


if __name__ == "__main__":
    B = 2                 # batch_size
    D_IN = 32             # word_input_dim
    H = 32                # word_hidden_dim
    VOCAB = 128           # vocab_size
    L = 8                 # max_sent_len

    key = jax.random.PRNGKey(0)
    k_par, k_topic, k_cap = jax.random.split(key, 3)

    params = init_params(k_par, D_IN, H, VOCAB)
    topic = jax.random.normal(k_topic, (B, D_IN), jnp.float32)
    caption = jax.random.randint(k_cap, (B, L), 0, VOCAB, jnp.int32)

    out = word_lstm_pallas(topic, caption, params)
    out = jax.block_until_ready(out)
    assert out.shape == (B, L, VOCAB), out.shape

    ref = jax.block_until_ready(word_lstm_reference(topic, caption, params))
    # bf16 matmul operands / bf16 gate+hidden intermediates (f32 accumulation
    # and f32 recurrent carry) vs. the pure-f32 reference.
    np.testing.assert_allclose(np.asarray(out), np.asarray(ref), rtol=2e-2, atol=2e-2)

    print("KERNEL_OK")
</pallas_src>

<mosaic_0001>
module attributes {stable_mosaic.version = 11 : i64} {
  func.func @_matmul_bias_kernel(%arg0: i32, %arg1: i32, %arg2: memref<64x32xbf16, #tpu.memory_space<vmem>>, %arg3: memref<32x128xbf16, #tpu.memory_space<vmem>>, %arg4: memref<1x128xf32, #tpu.memory_space<vmem>>, %arg5: memref<64x128xbf16, #tpu.memory_space<vmem>>) attributes {dimension_semantics = [#tpu.dimension_semantics<parallel>, #tpu.dimension_semantics<parallel>], iteration_bounds = array<i64: 1, 1>, scalar_prefetch = 0 : i64, scratch_operands = 0 : i64, tpu.core_type = #tpu.core_type<tc>, window_params = [{transform_indices = @transform_0, window_bounds = array<i64: 64, 32>}, {transform_indices = @transform_1, window_bounds = array<i64: 32, 128>}, {transform_indices = @transform_2, window_bounds = array<i64: 1, 128>}, {transform_indices = @transform_3, window_bounds = array<i64: 64, 128>}]} {
    %c0 = arith.constant 0 : index
    %c0_0 = arith.constant 0 : index
    %0 = vector.load %arg2[%c0, %c0_0] : memref<64x32xbf16, #tpu.memory_space<vmem>>, vector<64x32xbf16>
    %c0_1 = arith.constant 0 : index
    %c0_2 = arith.constant 0 : index
    %1 = vector.load %arg3[%c0_1, %c0_2] : memref<32x128xbf16, #tpu.memory_space<vmem>>, vector<32x128xbf16>
    %cst = arith.constant dense<0.000000e+00> : vector<64x128xf32>
    %2 = tpu.matmul %0, %1, %cst {dimension_numbers = #tpu.dot_dimension_numbers<[1], [0], [0], [1], [0, 0, 1, 1], [], []>} : vector<64x32xbf16>, vector<32x128xbf16>, vector<64x128xf32> -> vector<64x128xf32>
    %c0_3 = arith.constant 0 : index
    %c0_4 = arith.constant 0 : index
    %3 = vector.load %arg4[%c0_3, %c0_4] : memref<1x128xf32, #tpu.memory_space<vmem>>, vector<1x128xf32>
    %4 = vector.broadcast %3 : vector<1x128xf32> to vector<64x128xf32>
    %5 = arith.addf %2, %4 : vector<64x128xf32>
    %6 = arith.truncf %5 : vector<64x128xf32> to vector<64x128xbf16>
    %c0_5 = arith.constant 0 : index
    %c0_6 = arith.constant 0 : index
    %7 = vector.load %arg5[%c0_5, %c0_6] : memref<64x128xbf16, #tpu.memory_space<vmem>>, vector<64x128xbf16>
    tpu.vector_store %arg5[%c0_5, %c0_6], %6 {strides = array<i32>} : memref<64x128xbf16, #tpu.memory_space<vmem>>, vector<64x128xbf16>,
    return
  }
  func.func @transform_0(%arg0: i32, %arg1: i32) -> (i32, i32) {
    %c0_i32 = arith.constant 0 : i32
    %c0_i32_0 = arith.constant 0 : i32
    return %arg1, %c0_i32 : i32, i32
  }
  func.func @transform_1(%arg0: i32, %arg1: i32) -> (i32, i32) {
    %c0_i32 = arith.constant 0 : i32
    %c0_i32_0 = arith.constant 0 : i32
    return %c0_i32, %arg0 : i32, i32
  }
  func.func @transform_2(%arg0: i32, %arg1: i32) -> (i32, i32) {
    %c0_i32 = arith.constant 0 : i32
    %c0_i32_0 = arith.constant 0 : i32
    return %c0_i32, %arg0 : i32, i32
  }
  func.func @transform_3(%arg0: i32, %arg1: i32) -> (i32, i32) {
    %c0_i32 = arith.constant 0 : i32
    return %arg1, %arg0 : i32, i32
  }
}

</mosaic_0001>

<llo_original>
// kernel: tpu_custom_call.1
$region0: #{tpu_custom_call.1}
  #allocation0 [shape = 'u32[]', space=smem, size = 0x4, offset = 0x4, fixed_abs, tag = 'smem constant byte address 0x4 - core index']
  #allocation1 [shape = 'u32[72,128]{1,0:T(1,128)}', space=vmem, size = 0x9000, scoped, tag = 'internal scratch']
  %s0 = inlined_call_operand.vmem [shape: bf16[64,32], index: 0, kind: input, shape index: {}]
  %s1 = inlined_call_operand.vmem [shape: bf16[32,128], index: 1, kind: input, shape index: {}]
  %s2 = inlined_call_operand.vmem [shape: f32[1,128], index: 2, kind: input, shape index: {}]
  %s3 = inlined_call_operand.hbm [shape: bf16[64,128], index: 3, kind: output, shape index: {}]
  %s4 = sld [smem:[#allocation0]]
  $region22: #{tpu_custom_call.1} parent=0
    _
  %s6 = ssub.s32 1, %s4
  %s7 = scalar_select 0, %s6, %s4
  $region1: #{tpu_custom_call.1} parent=0
    #allocation2 [shape = 'u8[16384]{0}', space=vmem, size = 0x4000, scoped, tag = 'output window, operand 0, single buffered']
    #allocation3 [shape = 's32[1]{0}', space=sflag, size = 0x4, scoped, tag = 'scoped memory for tpu_custom_call.1']
    %8 = vsyncpa [#allocation3], 0
    // Predicated region
    $region2: #{tpu_custom_call.1} parent=1 // pred_check
      _
    $region3: #{tpu_custom_call.1} parent=1 // pred_check_branch
      %10 = sbr.rel (0) target = $region5
    $region4: #{tpu_custom_call.1} parent=1 // pred_region
      _
    $region5: #{tpu_custom_call.1} parent=1 // pred_fallthru
      _
    // Predicated region
    $region6: #{tpu_custom_call.1} parent=1 // pred_check
      _
    $region7: #{tpu_custom_call.1} parent=1 // pred_check_branch
      %12 = sbr.rel (0) target = $region9
    $region8: #{tpu_custom_call.1} parent=1 // pred_region
      _
    $region9: #{tpu_custom_call.1} parent=1 // pred_fallthru
      _
    // Predicated region
    $region10: #{tpu_custom_call.1} parent=1 // pred_check
      _
    $region11: #{tpu_custom_call.1} parent=1 // pred_check_branch
      %14 = sbr.rel (0) target = $region13
    $region12: #{tpu_custom_call.1} parent=1 // pred_region
      _
    $region13: #{tpu_custom_call.1} parent=1 // pred_fallthru
      _
    %v16 = vld [vmem:[%s0] sm:$0xf]
    %v17 = vld [vmem:[%s0 + $0x4] sm:$0xf]
    %v18 = vld [vmem:[%s0 + $0x8] sm:$0xf]
    %v19 = vld [vmem:[%s0 + $0xc] sm:$0xf]
    %v20 = vld [vmem:[%s0 + $0x10] sm:$0xf]
    %v21 = vld [vmem:[%s0 + $0x14] sm:$0xf]
    %v22 = vld [vmem:[%s0 + $0x18] sm:$0xf]
    %v23 = vld [vmem:[%s0 + $0x1c] sm:$0xf]
    %v24 = vld [vmem:[%s1] sm:$0xf]
    %v25 = vld [vmem:[%s1 + $0x4] sm:$0xf]
    %v26 = vld [vmem:[%s1 + $0x8] sm:$0xf]
    %v27 = vld [vmem:[%s1 + $0xc] sm:$0xf]
    %v28 = vld [vmem:[%s2] sm:$0x1]
    %v30 = vperm.slane %v28, 0
    %v40 = vunpack.c.l.b16 %v16
    %v41 = vunpack.c.l.b16 %v17
    %v42 = vunpack.c.l.b16 %v18
    %v43 = vunpack.c.l.b16 %v19
    %v44 = vunpack.c.l.b16 %v20
    %v45 = vunpack.c.l.b16 %v21
    %v46 = vunpack.c.l.b16 %v22
    %v47 = vunpack.c.l.b16 %v23
    %v48 = vpack.c.b16 %v41, %v40
    %v49 = vpack.c.b16 %v43, %v42
    %v50 = vpack.c.b16 %v45, %v44
    %v51 = vpack.c.b16 %v47, %v46
    %v56 = vunpack.c.l.b16 %v24
    %v57 = vunpack.c.l.b16 %v25
    %v58 = vunpack.c.l.b16 %v26
    %v59 = vunpack.c.l.b16 %v27
    %v60 = vpack.c.b16 %v57, %v56
    %v61 = vpack.c.b16 %v59, %v58
    %vm64 = vcmask 261120
    %v66 = vsel %vm64, %v48, 0
    %v69 = vsel %vm64, %v49, 0
    %v72 = vsel %vm64, %v50, 0
    %v75 = vsel %vm64, %v51, 0
    %77 = vmatpush.bf16.msra.mxu0 0
    %78 = vmatpush.bf16.msra.mxu0 0
    %79 = vmatpush.bf16.msra.mxu0 0
    %80 = vmatpush.bf16.msra.mxu0 0
    %81 = vmatpush.bf16.msra.mxu0 0
    %82 = vmatpush.bf16.msra.mxu0 0
    %83 = vmatpush.bf16.msra.mxu0 %v61
    %84 = vmatpush.bf16.msra.mxu0 %v60
    %85 = vmatmul.bf16.gmra.mxu0 %v66
    %v86 = vpop.f32.mrf.mxu0
    %v87 = vadd.f32 %v30, %v86
    %v88 = vpop.f32.mrf.mxu0
    %v89 = vadd.f32 %v30, %v88
    %90 = vmatmul.bf16.gmra.mxu0 %v69
    %v91 = vpop.f32.mrf.mxu0
    %v92 = vadd.f32 %v30, %v91
    %v93 = vpop.f32.mrf.mxu0
    %v94 = vadd.f32 %v30, %v93
    %95 = vmatmul.bf16.gmra.mxu0 %v72
    %v96 = vpop.f32.mrf.mxu0
    %v97 = vadd.f32 %v30, %v96
    %v98 = vpop.f32.mrf.mxu0
    %v99 = vadd.f32 %v30, %v98
    %100 = vmatmul.bf16.gmra.mxu0 %v75
    %v101 = vpop.f32.mrf.mxu0
    %v102 = vadd.f32 %v30, %v101
    %v103 = vpop.f32.mrf.mxu0
    %v104 = vadd.f32 %v30, %v103
    %105 = vdwg.mxu0
    %v106 = vpack.c.bf16 %v87, %v87
    %v107 = vpack.c.bf16 %v89, %v89
    %v108 = vpack.c.bf16 %v92, %v92
    %v109 = vpack.c.bf16 %v94, %v94
    %v110 = vpack.c.bf16 %v97, %v97
    %v111 = vpack.c.bf16 %v99, %v99
    %v112 = vpack.c.bf16 %v102, %v102
    %v113 = vpack.c.bf16 %v104, %v104
    %114 = vst [vmem:[#allocation2] sm:$0xf] %v106
    %115 = vst [vmem:[#allocation2 + $0x4] sm:$0xf] %v107
    %116 = vst [vmem:[#allocation2 + $0x8] sm:$0xf] %v108
    %117 = vst [vmem:[#allocation2 + $0xc] sm:$0xf] %v109
    %118 = vst [vmem:[#allocation2 + $0x10] sm:$0xf] %v110
    %119 = vst [vmem:[#allocation2 + $0x14] sm:$0xf] %v111
    %120 = vst [vmem:[#allocation2 + $0x18] sm:$0xf] %v112
    %121 = vst [vmem:[#allocation2 + $0x1c] sm:$0xf] %v113
    // Predicated region
    $region14: #{tpu_custom_call.1} parent=1 // pred_check
      _
    $region15: #{tpu_custom_call.1} parent=1 // pred_check_branch
      %123 = sbr.rel (0) target = $region17
    $region16: #{tpu_custom_call.1} parent=1 // pred_region
      %125 = vsyncadd [#allocation3], 0
      %s126 = sshll.u32 [#allocation2], 4
      %s127 = int_to_ptr.vmem [resolvable:$true] %s126
      %s128 = sshll.u32 %s3, 4
      %s129 = int_to_ptr.hbm [resolvable:$true] %s128
      %134 = dma.vmem_to_hbm [thread:$0]  %s127, 512, %s129, [#allocation3], 64, 64, 4
    $region17: #{tpu_custom_call.1} parent=1 // pred_fallthru
      _
    // Predicated region
    $region18: #{tpu_custom_call.1} parent=1 // pred_check
      _
    $region19: #{tpu_custom_call.1} parent=1 // pred_check_branch
      %136 = sbr.rel (0) target = $region21
    $region20: #{tpu_custom_call.1} parent=1 // pred_region
      %138 = dma.done [#allocation3], 512
    $region21: #{tpu_custom_call.1} parent=1 // pred_fallthru
      _
    %139 = vsyncpa [#allocation3], 1

</llo_original>
